<compile_context>
chip_gen: v5e
topology: v5e:2x2
jax: 0.10.0
libtpu: 0.0.40
codegen_flags: <defaults>
</compile_context>

<pallas_src>
import jax
import jax.numpy as jnp
from jax.experimental import pallas as pl
from jax.experimental.pallas import tpu as pltpu

LANE = 128      # pad all feature/channel dims to a full vreg lane width
SUBLANE = 8     # pad per-sample length blocks to sublane multiples


def _ceil_to(x, m):
    return (x + m - 1) // m * m


# ---------------------------------------------------------------------------
# Static architecture description (all Python ints -> safe under jit)
# ---------------------------------------------------------------------------
def build_config(num_inputs, num_hiddens_per_conv_layer, num_hiddens_per_fc_layer,
                 num_outputs, kernel_size_per_conv_layer, stride_per_conv_layer,
                 activation_function="tanh"):
    assert len(num_hiddens_per_conv_layer) >= 1, "need at least one conv layer"
    conv = []
    c_in, l_in = 1, num_inputs
    for c_out, k, s in zip(num_hiddens_per_conv_layer,
                           kernel_size_per_conv_layer,
                           stride_per_conv_layer):
        l_out = (l_in - k) // s + 1
        conv.append(dict(
            c_in=c_in, c_out=c_out, k=k, s=s,
            l_in=l_in, l_out=l_out,
            c_in_pad=_ceil_to(c_in, LANE), c_out_pad=_ceil_to(c_out, LANE),
            l_in_pad=_ceil_to(l_in, SUBLANE), l_out_pad=_ceil_to(l_out, SUBLANE),
        ))
        c_in, l_in = c_out, l_out

    fc = []
    f_in = c_in * l_in        # torch.flatten(x, 1) of (N, C, L)
    for h in list(num_hiddens_per_fc_layer) + [num_outputs]:
        fc.append(dict(f_in=f_in, f_out=h,
                       f_in_pad=_ceil_to(f_in, LANE), f_out_pad=_ceil_to(h, LANE)))
        f_in = h

    return dict(conv=conv, fc=fc,
                last_c=conv[-1]["c_out"], last_l=conv[-1]["l_out"],
                last_c_pad=conv[-1]["c_out_pad"], last_l_pad=conv[-1]["l_out_pad"],
                num_outputs=num_outputs,
                activation=activation_function)


# ---------------------------------------------------------------------------
# Parameters: raw (torch layout, for the reference) + kernel layout (pre-
# transposed & zero-padded to lane-dense shapes, done ONCE outside the forward)
# ---------------------------------------------------------------------------
def make_params(key, cfg):
    raw = {"conv": [], "fc": []}
    kern = {"conv": [], "fc": []}

    for lc in cfg["conv"]:
        key, kw, kb = jax.random.split(key, 3)
        w = jax.random.uniform(kw, (lc["c_out"], lc["c_in"], lc["k"]),
                               jnp.float32, -0.5, 0.5)
        b = jax.random.uniform(kb, (lc["c_out"],), jnp.float32, -0.5, 0.5)
        raw["conv"].append((w, b))
        # Kernel layout: (K, C_in_pad, C_out_pad), wk[k, ci, co] = w[co, ci, k]
        wk = jnp.transpose(w, (2, 1, 0))
        wk = jnp.pad(wk, ((0, 0),
                          (0, lc["c_in_pad"] - lc["c_in"]),
                          (0, lc["c_out_pad"] - lc["c_out"])))
        bp = jnp.pad(b, (0, lc["c_out_pad"] - lc["c_out"]))[None, :]
        kern["conv"].append((wk, bp))

    last_c, last_l = cfg["last_c"], cfg["last_l"]
    last_c_pad = cfg["last_c_pad"]
    for j, lf in enumerate(cfg["fc"]):
        key, kw, kb = jax.random.split(key, 3)
        w = jax.random.uniform(kw, (lf["f_out"], lf["f_in"]), jnp.float32, -0.5, 0.5)
        b = jax.random.uniform(kb, (lf["f_out"],), jnp.float32, -0.5, 0.5)
        raw["fc"].append((w, b))
        if j == 0:
            # Fold torch.flatten(x,1) (feature index f = c*L + l) into the weight:
            # (H, C*L) -> (L, C_pad, H_pad) with ws[l, c, h] = w[h, c*L + l]
            ws = jnp.transpose(w.reshape(lf["f_out"], last_c, last_l), (2, 1, 0))
            ws = jnp.pad(ws, ((0, 0),
                              (0, last_c_pad - last_c),
                              (0, lf["f_out_pad"] - lf["f_out"])))
        else:
            ws = jnp.pad(w.T, ((0, lf["f_in_pad"] - lf["f_in"]),
                               (0, lf["f_out_pad"] - lf["f_out"])))
        bp = jnp.pad(b, (0, lf["f_out_pad"] - lf["f_out"]))[None, :]
        kern["fc"].append((ws, bp))

    return kern, raw


# ---------------------------------------------------------------------------
# Fused kernel: whole CNN forward in one pallas_call, activations in VMEM scratch
# ---------------------------------------------------------------------------
def _make_kernel(cfg, batch):
    conv_cfg = cfg["conv"]
    fc_cfg = cfg["fc"]
    n_conv, n_fc = len(conv_cfg), len(fc_cfg)
    last_l, last_l_pad = cfg["last_l"], cfg["last_l_pad"]
    if cfg["activation"] == "tanh":
        act = jnp.tanh
    else:
        act = lambda v: jnp.maximum(v, 0.0)   # relu path of the module

    def kernel(*refs):
        i = 0
        x_ref = refs[i]; i += 1
        conv_refs = []
        for _ in range(n_conv):
            conv_refs.append((refs[i], refs[i + 1])); i += 2
        fc_refs = []
        for _ in range(n_fc):
            fc_refs.append((refs[i], refs[i + 1])); i += 2
        out_ref = refs[i]; i += 1
        scratch = list(refs[i:])

        # ---- conv stack: out[n,t,co] = act(b[co] + sum_k in[n, s*t+k, :] @ Wk) ----
        src = x_ref
        for li, lc in enumerate(conv_cfg):
            w_ref, b_ref = conv_refs[li]
            dst = scratch[li]
            k_sz, s = lc["k"], lc["s"]
            l_in_pad, l_out, l_out_pad = lc["l_in_pad"], lc["l_out"], lc["l_out_pad"]
            c_out_pad = lc["c_out_pad"]
            bias = b_ref[...]                                    # (1, c_out_pad)
            for n in range(batch):                               # tiny static loop
                base = n * l_in_pad
                acc = jnp.zeros((l_out, c_out_pad), jnp.float32)
                for k in range(k_sz):
                    if s == 1:
                        a_k = src[pl.ds(base + k, l_out), :]
                    else:
                        a_k = src[pl.ds(base + k, l_out, s), :]  # strided rows
                    acc = acc + jnp.dot(a_k, w_ref[k],
                                        preferred_element_type=jnp.float32)
                dst[pl.ds(n * l_out_pad, l_out), :] = act(acc + bias)
            src = dst

        # ---- first FC folds torch.flatten: per output-position matmuls ----
        w0_ref, b0_ref = fc_refs[0]
        acc = jnp.zeros((batch, fc_cfg[0]["f_out_pad"]), jnp.float32)
        for l in range(last_l):
            a_l = src[pl.ds(l, batch, last_l_pad), :]            # (batch, C_pad)
            acc = acc + jnp.dot(a_l, w0_ref[l],
                                preferred_element_type=jnp.float32)
        x = acc + b0_ref[...]
        if n_fc > 1:
            x = act(x)

        # ---- remaining FC layers (last one without activation) ----
        for j in range(1, n_fc):
            w_ref, b_ref = fc_refs[j]
            x = jnp.dot(x, w_ref[...], preferred_element_type=jnp.float32) + b_ref[...]
            if j < n_fc - 1:
                x = act(x)

        out_ref[...] = x

    return kernel


def make_forward(cfg):
    conv_cfg = cfg["conv"]
    c0 = conv_cfg[0]["c_in"]
    c0_pad = conv_cfg[0]["c_in_pad"]
    l0 = conv_cfg[0]["l_in"]
    l0_pad = conv_cfg[0]["l_in_pad"]
    out_pad = cfg["fc"][-1]["f_out_pad"]
    num_outputs = cfg["num_outputs"]

    def forward(x, params):
        batch = x.shape[0]
        assert x.shape[1] == c0 and x.shape[2] == l0
        # NCW (torch Conv1d layout) -> per-sample channels-last rows, lane-padded.
        xt = jnp.transpose(x, (0, 2, 1))                          # (N, L0, C0)
        xt = jnp.pad(xt, ((0, 0), (0, l0_pad - l0), (0, c0_pad - c0)))
        x2d = xt.reshape(batch * l0_pad, c0_pad)

        inputs = [x2d]
        for w, b in params["conv"]:
            inputs += [w, b]
        for w, b in params["fc"]:
            inputs += [w, b]

        scratch_shapes = [
            pltpu.VMEM((batch * lc["l_out_pad"], lc["c_out_pad"]), jnp.float32)
            for lc in conv_cfg
        ]

        out = pl.pallas_call(
            _make_kernel(cfg, batch),
            out_shape=jax.ShapeDtypeStruct((batch, out_pad), jnp.float32),
            in_specs=[pl.BlockSpec(memory_space=pltpu.MemorySpace.VMEM)] * len(inputs),
            out_specs=pl.BlockSpec(memory_space=pltpu.MemorySpace.VMEM),
            scratch_shapes=scratch_shapes,
        )(*inputs)
        return out[:, :num_outputs]

    return forward


# ---------------------------------------------------------------------------
# Pure-JAX reference (torch-layout weights) for a correctness sanity check
# ---------------------------------------------------------------------------
def cnn_forward_ref(x, raw_params, strides):
    for (w, b), s in zip(raw_params["conv"], strides):
        y = jax.lax.conv_general_dilated(
            x, w, window_strides=(s,), padding="VALID",
            dimension_numbers=("NCH", "OIH", "NCH"))
        x = jnp.tanh(y + b[None, :, None])
    x = x.reshape(x.shape[0], -1)
    fcs = raw_params["fc"]
    for (w, b) in fcs[:-1]:
        x = jnp.tanh(x @ w.T + b)
    w, b = fcs[-1]
    return x @ w.T + b


if __name__ == "__main__":
    key = jax.random.PRNGKey(0)
    key, kx, kp = jax.random.split(key, 3)

    # Small config consistent with the module's forward:
    batch = 2
    num_inputs = 16
    num_hiddens_per_conv_layer = [4, 8]
    num_hiddens_per_fc_layer = [32]
    num_outputs = 5
    kernel_size_per_conv_layer = [3, 3]
    stride_per_conv_layer = [1, 2]

    cfg = build_config(num_inputs, num_hiddens_per_conv_layer,
                       num_hiddens_per_fc_layer, num_outputs,
                       kernel_size_per_conv_layer, stride_per_conv_layer,
                       activation_function="tanh")
    params, raw_params = make_params(kp, cfg)

    # Input: (batch, channels=1, width) — PyTorch Conv1d NCL layout.
    x = jax.random.normal(kx, (batch, 1, num_inputs), jnp.float32)

    forward = jax.jit(make_forward(cfg))          # params pytree = arrays only
    out = jax.block_until_ready(forward(x, params))

    ref = cnn_forward_ref(x, raw_params, stride_per_conv_layer)
    assert out.shape == (batch, num_outputs)
    assert jnp.allclose(out, ref, atol=1e-4, rtol=1e-4), "mismatch vs reference"

    print("KERNEL_OK")
</pallas_src>

<mosaic_0001>
module attributes {stable_mosaic.version = 11 : i64} {
  func.func @kernel(%arg0: memref<32x128xf32, #tpu.memory_space<vmem>>, %arg1: memref<3x128x128xf32, #tpu.memory_space<vmem>>, %arg2: memref<1x128xf32, #tpu.memory_space<vmem>>, %arg3: memref<3x128x128xf32, #tpu.memory_space<vmem>>, %arg4: memref<1x128xf32, #tpu.memory_space<vmem>>, %arg5: memref<6x128x128xf32, #tpu.memory_space<vmem>>, %arg6: memref<1x128xf32, #tpu.memory_space<vmem>>, %arg7: memref<128x128xf32, #tpu.memory_space<vmem>>, %arg8: memref<1x128xf32, #tpu.memory_space<vmem>>, %arg9: memref<2x128xf32, #tpu.memory_space<vmem>>, %arg10: memref<32x128xf32, #tpu.memory_space<vmem>>, %arg11: memref<16x128xf32, #tpu.memory_space<vmem>>) attributes {dimension_semantics = [], scalar_prefetch = 0 : i64, scratch_operands = 2 : i64, tpu.core_type = #tpu.core_type<tc>} {
    %c0 = arith.constant 0 : index
    %c0_0 = arith.constant 0 : index
    %0 = vector.load %arg2[%c0, %c0_0] : memref<1x128xf32, #tpu.memory_space<vmem>>, vector<1x128xf32>
    %cst = arith.constant 0.000000e+00 : f32
    %1 = vector.broadcast %cst : f32 to vector<14x128xf32>
    %c0_1 = arith.constant 0 : index
    %c0_2 = arith.constant 0 : index
    %2 = vector.load %arg0[%c0_1, %c0_2] : memref<32x128xf32, #tpu.memory_space<vmem>>, vector<14x128xf32>
    %c0_3 = arith.constant 0 : index
    %c0_4 = arith.constant 0 : index
    %c0_5 = arith.constant 0 : index
    %3 = vector.load %arg1[%c0_3, %c0_4, %c0_5] : memref<3x128x128xf32, #tpu.memory_space<vmem>>, vector<1x128x128xf32>
    %4 = vector.shape_cast %3 : vector<1x128x128xf32> to vector<128x128xf32>
    %cst_6 = arith.constant dense<0.000000e+00> : vector<14x128xf32>
    %5 = tpu.matmul %2, %4, %cst_6 {dimension_numbers = #tpu.dot_dimension_numbers<[1], [0], [0], [1], [0, 0, 1, 1], [], []>} : vector<14x128xf32>, vector<128x128xf32>, vector<14x128xf32> -> vector<14x128xf32>
    %6 = arith.addf %1, %5 : vector<14x128xf32>
    %c1 = arith.constant 1 : index
    %c0_7 = arith.constant 0 : index
    %7 = vector.load %arg0[%c1, %c0_7] : memref<32x128xf32, #tpu.memory_space<vmem>>, vector<14x128xf32>
    %c1_8 = arith.constant 1 : index
    %c0_9 = arith.constant 0 : index
    %c0_10 = arith.constant 0 : index
    %8 = vector.load %arg1[%c1_8, %c0_9, %c0_10] : memref<3x128x128xf32, #tpu.memory_space<vmem>>, vector<1x128x128xf32>
    %9 = vector.shape_cast %8 : vector<1x128x128xf32> to vector<128x128xf32>
    %cst_11 = arith.constant dense<0.000000e+00> : vector<14x128xf32>
    %10 = tpu.matmul %7, %9, %cst_11 {dimension_numbers = #tpu.dot_dimension_numbers<[1], [0], [0], [1], [0, 0, 1, 1], [], []>} : vector<14x128xf32>, vector<128x128xf32>, vector<14x128xf32> -> vector<14x128xf32>
    %11 = arith.addf %6, %10 : vector<14x128xf32>
    %c2 = arith.constant 2 : index
    %c0_12 = arith.constant 0 : index
    %12 = vector.load %arg0[%c2, %c0_12] : memref<32x128xf32, #tpu.memory_space<vmem>>, vector<14x128xf32>
    %c2_13 = arith.constant 2 : index
    %c0_14 = arith.constant 0 : index
    %c0_15 = arith.constant 0 : index
    %13 = vector.load %arg1[%c2_13, %c0_14, %c0_15] : memref<3x128x128xf32, #tpu.memory_space<vmem>>, vector<1x128x128xf32>
    %14 = vector.shape_cast %13 : vector<1x128x128xf32> to vector<128x128xf32>
    %cst_16 = arith.constant dense<0.000000e+00> : vector<14x128xf32>
    %15 = tpu.matmul %12, %14, %cst_16 {dimension_numbers = #tpu.dot_dimension_numbers<[1], [0], [0], [1], [0, 0, 1, 1], [], []>} : vector<14x128xf32>, vector<128x128xf32>, vector<14x128xf32> -> vector<14x128xf32>
    %16 = arith.addf %11, %15 : vector<14x128xf32>
    %17 = vector.broadcast %0 : vector<1x128xf32> to vector<14x128xf32>
    %18 = arith.addf %16, %17 : vector<14x128xf32>
    %19 = math.tanh %18 : vector<14x128xf32>
    %c0_17 = arith.constant 0 : index
    %c0_18 = arith.constant 0 : index
    %20 = vector.load %arg10[%c0_17, %c0_18] : memref<32x128xf32, #tpu.memory_space<vmem>>, vector<14x128xf32>
    tpu.vector_store %arg10[%c0_17, %c0_18], %19 {strides = array<i32>} : memref<32x128xf32, #tpu.memory_space<vmem>>, vector<14x128xf32>,
    %cst_19 = arith.constant 0.000000e+00 : f32
    %21 = vector.broadcast %cst_19 : f32 to vector<14x128xf32>
    %c16 = arith.constant 16 : index
    %c0_20 = arith.constant 0 : index
    %22 = vector.load %arg0[%c16, %c0_20] : memref<32x128xf32, #tpu.memory_space<vmem>>, vector<14x128xf32>
    %c0_21 = arith.constant 0 : index
    %c0_22 = arith.constant 0 : index
    %c0_23 = arith.constant 0 : index
    %23 = vector.load %arg1[%c0_21, %c0_22, %c0_23] : memref<3x128x128xf32, #tpu.memory_space<vmem>>, vector<1x128x128xf32>
    %24 = vector.shape_cast %23 : vector<1x128x128xf32> to vector<128x128xf32>
    %cst_24 = arith.constant dense<0.000000e+00> : vector<14x128xf32>
    %25 = tpu.matmul %22, %24, %cst_24 {dimension_numbers = #tpu.dot_dimension_numbers<[1], [0], [0], [1], [0, 0, 1, 1], [], []>} : vector<14x128xf32>, vector<128x128xf32>, vector<14x128xf32> -> vector<14x128xf32>
    %26 = arith.addf %21, %25 : vector<14x128xf32>
    %c17 = arith.constant 17 : index
    %c0_25 = arith.constant 0 : index
    %27 = vector.load %arg0[%c17, %c0_25] : memref<32x128xf32, #tpu.memory_space<vmem>>, vector<14x128xf32>
    %c1_26 = arith.constant 1 : index
    %c0_27 = arith.constant 0 : index
    %c0_28 = arith.constant 0 : index
    %28 = vector.load %arg1[%c1_26, %c0_27, %c0_28] : memref<3x128x128xf32, #tpu.memory_space<vmem>>, vector<1x128x128xf32>
    %29 = vector.shape_cast %28 : vector<1x128x128xf32> to vector<128x128xf32>
    %cst_29 = arith.constant dense<0.000000e+00> : vector<14x128xf32>
    %30 = tpu.matmul %27, %29, %cst_29 {dimension_numbers = #tpu.dot_dimension_numbers<[1], [0], [0], [1], [0, 0, 1, 1], [], []>} : vector<14x128xf32>, vector<128x128xf32>, vector<14x128xf32> -> vector<14x128xf32>
    %31 = arith.addf %26, %30 : vector<14x128xf32>
    %c18 = arith.constant 18 : index
    %c0_30 = arith.constant 0 : index
    %32 = vector.load %arg0[%c18, %c0_30] : memref<32x128xf32, #tpu.memory_space<vmem>>, vector<14x128xf32>
    %c2_31 = arith.constant 2 : index
    %c0_32 = arith.constant 0 : index
    %c0_33 = arith.constant 0 : index
    %33 = vector.load %arg1[%c2_31, %c0_32, %c0_33] : memref<3x128x128xf32, #tpu.memory_space<vmem>>, vector<1x128x128xf32>
    %34 = vector.shape_cast %33 : vector<1x128x128xf32> to vector<128x128xf32>
    %cst_34 = arith.constant dense<0.000000e+00> : vector<14x128xf32>
    %35 = tpu.matmul %32, %34, %cst_34 {dimension_numbers = #tpu.dot_dimension_numbers<[1], [0], [0], [1], [0, 0, 1, 1], [], []>} : vector<14x128xf32>, vector<128x128xf32>, vector<14x128xf32> -> vector<14x128xf32>
    %36 = arith.addf %31, %35 : vector<14x128xf32>
    %37 = vector.broadcast %0 : vector<1x128xf32> to vector<14x128xf32>
    %38 = arith.addf %36, %37 : vector<14x128xf32>
    %39 = math.tanh %38 : vector<14x128xf32>
    %c16_35 = arith.constant 16 : index
    %c0_36 = arith.constant 0 : index
    %40 = vector.load %arg10[%c16_35, %c0_36] : memref<32x128xf32, #tpu.memory_space<vmem>>, vector<14x128xf32>
    tpu.vector_store %arg10[%c16_35, %c0_36], %39 {strides = array<i32>} : memref<32x128xf32, #tpu.memory_space<vmem>>, vector<14x128xf32>,
    %c0_37 = arith.constant 0 : index
    %c0_38 = arith.constant 0 : index
    %41 = vector.load %arg4[%c0_37, %c0_38] : memref<1x128xf32, #tpu.memory_space<vmem>>, vector<1x128xf32>
    %cst_39 = arith.constant 0.000000e+00 : f32
    %42 = vector.broadcast %cst_39 : f32 to vector<6x128xf32>
    %c0_40 = arith.constant 0 : index
    %c0_41 = arith.constant 0 : index
    %43 = tpu.strided_load %arg10[%c0_40, %c0_41] {strides = array<i32: 2, 1>} : memref<32x128xf32, #tpu.memory_space<vmem>>, vector<6x128xf32>
    %c0_42 = arith.constant 0 : index
    %c0_43 = arith.constant 0 : index
    %c0_44 = arith.constant 0 : index
    %44 = vector.load %arg3[%c0_42, %c0_43, %c0_44] : memref<3x128x128xf32, #tpu.memory_space<vmem>>, vector<1x128x128xf32>
    %45 = vector.shape_cast %44 : vector<1x128x128xf32> to vector<128x128xf32>
    %cst_45 = arith.constant dense<0.000000e+00> : vector<6x128xf32>
    %46 = tpu.matmul %43, %45, %cst_45 {dimension_numbers = #tpu.dot_dimension_numbers<[1], [0], [0], [1], [0, 0, 1, 1], [], []>} : vector<6x128xf32>, vector<128x128xf32>, vector<6x128xf32> -> vector<6x128xf32>
    %47 = arith.addf %42, %46 : vector<6x128xf32>
    %c1_46 = arith.constant 1 : index
    %c0_47 = arith.constant 0 : index
    %48 = tpu.strided_load %arg10[%c1_46, %c0_47] {strides = array<i32: 2, 1>} : memref<32x128xf32, #tpu.memory_space<vmem>>, vector<6x128xf32>
    %c1_48 = arith.constant 1 : index
    %c0_49 = arith.constant 0 : index
    %c0_50 = arith.constant 0 : index
    %49 = vector.load %arg3[%c1_48, %c0_49, %c0_50] : memref<3x128x128xf32, #tpu.memory_space<vmem>>, vector<1x128x128xf32>
    %50 = vector.shape_cast %49 : vector<1x128x128xf32> to vector<128x128xf32>
    %cst_51 = arith.constant dense<0.000000e+00> : vector<6x128xf32>
    %51 = tpu.matmul %48, %50, %cst_51 {dimension_numbers = #tpu.dot_dimension_numbers<[1], [0], [0], [1], [0, 0, 1, 1], [], []>} : vector<6x128xf32>, vector<128x128xf32>, vector<6x128xf32> -> vector<6x128xf32>
    %52 = arith.addf %47, %51 : vector<6x128xf32>
    %c2_52 = arith.constant 2 : index
    %c0_53 = arith.constant 0 : index
    %53 = tpu.strided_load %arg10[%c2_52, %c0_53] {strides = array<i32: 2, 1>} : memref<32x128xf32, #tpu.memory_space<vmem>>, vector<6x128xf32>
    %c2_54 = arith.constant 2 : index
    %c0_55 = arith.constant 0 : index
    %c0_56 = arith.constant 0 : index
    %54 = vector.load %arg3[%c2_54, %c0_55, %c0_56] : memref<3x128x128xf32, #tpu.memory_space<vmem>>, vector<1x128x128xf32>
    %55 = vector.shape_cast %54 : vector<1x128x128xf32> to vector<128x128xf32>
    %cst_57 = arith.constant dense<0.000000e+00> : vector<6x128xf32>
    %56 = tpu.matmul %53, %55, %cst_57 {dimension_numbers = #tpu.dot_dimension_numbers<[1], [0], [0], [1], [0, 0, 1, 1], [], []>} : vector<6x128xf32>, vector<128x128xf32>, vector<6x128xf32> -> vector<6x128xf32>
    %57 = arith.addf %52, %56 : vector<6x128xf32>
    %58 = vector.broadcast %41 : vector<1x128xf32> to vector<6x128xf32>
    %59 = arith.addf %57, %58 : vector<6x128xf32>
    %60 = math.tanh %59 : vector<6x128xf32>
    %c0_58 = arith.constant 0 : index
    %c0_59 = arith.constant 0 : index
    %61 = vector.load %arg11[%c0_58, %c0_59] : memref<16x128xf32, #tpu.memory_space<vmem>>, vector<6x128xf32>
    tpu.vector_store %arg11[%c0_58, %c0_59], %60 {strides = array<i32>} : memref<16x128xf32, #tpu.memory_space<vmem>>, vector<6x128xf32>,
    %cst_60 = arith.constant 0.000000e+00 : f32
    %62 = vector.broadcast %cst_60 : f32 to vector<6x128xf32>
    %c16_61 = arith.constant 16 : index
    %c0_62 = arith.constant 0 : index
    %63 = tpu.strided_load %arg10[%c16_61, %c0_62] {strides = array<i32: 2, 1>} : memref<32x128xf32, #tpu.memory_space<vmem>>, vector<6x128xf32>
    %c0_63 = arith.constant 0 : index
    %c0_64 = arith.constant 0 : index
    %c0_65 = arith.constant 0 : index
    %64 = vector.load %arg3[%c0_63, %c0_64, %c0_65] : memref<3x128x128xf32, #tpu.memory_space<vmem>>, vector<1x128x128xf32>
    %65 = vector.shape_cast %64 : vector<1x128x128xf32> to vector<128x128xf32>
    %cst_66 = arith.constant dense<0.000000e+00> : vector<6x128xf32>
    %66 = tpu.matmul %63, %65, %cst_66 {dimension_numbers = #tpu.dot_dimension_numbers<[1], [0], [0], [1], [0, 0, 1, 1], [], []>} : vector<6x128xf32>, vector<128x128xf32>, vector<6x128xf32> -> vector<6x128xf32>
    %67 = arith.addf %62, %66 : vector<6x128xf32>
    %c17_67 = arith.constant 17 : index
    %c0_68 = arith.constant 0 : index
    %68 = tpu.strided_load %arg10[%c17_67, %c0_68] {strides = array<i32: 2, 1>} : memref<32x128xf32, #tpu.memory_space<vmem>>, vector<6x128xf32>
    %c1_69 = arith.constant 1 : index
    %c0_70 = arith.constant 0 : index
    %c0_71 = arith.constant 0 : index
    %69 = vector.load %arg3[%c1_69, %c0_70, %c0_71] : memref<3x128x128xf32, #tpu.memory_space<vmem>>, vector<1x128x128xf32>
    %70 = vector.shape_cast %69 : vector<1x128x128xf32> to vector<128x128xf32>
    %cst_72 = arith.constant dense<0.000000e+00> : vector<6x128xf32>
    %71 = tpu.matmul %68, %70, %cst_72 {dimension_numbers = #tpu.dot_dimension_numbers<[1], [0], [0], [1], [0, 0, 1, 1], [], []>} : vector<6x128xf32>, vector<128x128xf32>, vector<6x128xf32> -> vector<6x128xf32>
    %72 = arith.addf %67, %71 : vector<6x128xf32>
    %c18_73 = arith.constant 18 : index
    %c0_74 = arith.constant 0 : index
    %73 = tpu.strided_load %arg10[%c18_73, %c0_74] {strides = array<i32: 2, 1>} : memref<32x128xf32, #tpu.memory_space<vmem>>, vector<6x128xf32>
    %c2_75 = arith.constant 2 : index
    %c0_76 = arith.constant 0 : index
    %c0_77 = arith.constant 0 : index
    %74 = vector.load %arg3[%c2_75, %c0_76, %c0_77] : memref<3x128x128xf32, #tpu.memory_space<vmem>>, vector<1x128x128xf32>
    %75 = vector.shape_cast %74 : vector<1x128x128xf32> to vector<128x128xf32>
    %cst_78 = arith.constant dense<0.000000e+00> : vector<6x128xf32>
    %76 = tpu.matmul %73, %75, %cst_78 {dimension_numbers = #tpu.dot_dimension_numbers<[1], [0], [0], [1], [0, 0, 1, 1], [], []>} : vector<6x128xf32>, vector<128x128xf32>, vector<6x128xf32> -> vector<6x128xf32>
    %77 = arith.addf %72, %76 : vector<6x128xf32>
    %78 = vector.broadcast %41 : vector<1x128xf32> to vector<6x128xf32>
    %79 = arith.addf %77, %78 : vector<6x128xf32>
    %80 = math.tanh %79 : vector<6x128xf32>
    %c8 = arith.constant 8 : index
    %c0_79 = arith.constant 0 : index
    %81 = vector.load %arg11[%c8, %c0_79] : memref<16x128xf32, #tpu.memory_space<vmem>>, vector<6x128xf32>
    tpu.vector_store %arg11[%c8, %c0_79], %80 {strides = array<i32>} : memref<16x128xf32, #tpu.memory_space<vmem>>, vector<6x128xf32>,
    %cst_80 = arith.constant 0.000000e+00 : f32
    %82 = vector.broadcast %cst_80 : f32 to vector<2x128xf32>
    %c0_81 = arith.constant 0 : index
    %c0_82 = arith.constant 0 : index
    %83 = tpu.strided_load %arg11[%c0_81, %c0_82] {strides = array<i32: 8, 1>} : memref<16x128xf32, #tpu.memory_space<vmem>>, vector<2x128xf32>
    %c0_83 = arith.constant 0 : index
    %c0_84 = arith.constant 0 : index
    %c0_85 = arith.constant 0 : index
    %84 = vector.load %arg5[%c0_83, %c0_84, %c0_85] : memref<6x128x128xf32, #tpu.memory_space<vmem>>, vector<1x128x128xf32>
    %85 = vector.shape_cast %84 : vector<1x128x128xf32> to vector<128x128xf32>
    %cst_86 = arith.constant dense<0.000000e+00> : vector<2x128xf32>
    %86 = tpu.matmul %83, %85, %cst_86 {dimension_numbers = #tpu.dot_dimension_numbers<[1], [0], [0], [1], [0, 0, 1, 1], [], []>} : vector<2x128xf32>, vector<128x128xf32>, vector<2x128xf32> -> vector<2x128xf32>
    %87 = arith.addf %82, %86 : vector<2x128xf32>
    %c1_87 = arith.constant 1 : index
    %c0_88 = arith.constant 0 : index
    %88 = tpu.strided_load %arg11[%c1_87, %c0_88] {strides = array<i32: 8, 1>} : memref<16x128xf32, #tpu.memory_space<vmem>>, vector<2x128xf32>
    %c1_89 = arith.constant 1 : index
    %c0_90 = arith.constant 0 : index
    %c0_91 = arith.constant 0 : index
    %89 = vector.load %arg5[%c1_89, %c0_90, %c0_91] : memref<6x128x128xf32, #tpu.memory_space<vmem>>, vector<1x128x128xf32>
    %90 = vector.shape_cast %89 : vector<1x128x128xf32> to vector<128x128xf32>
    %cst_92 = arith.constant dense<0.000000e+00> : vector<2x128xf32>
    %91 = tpu.matmul %88, %90, %cst_92 {dimension_numbers = #tpu.dot_dimension_numbers<[1], [0], [0], [1], [0, 0, 1, 1], [], []>} : vector<2x128xf32>, vector<128x128xf32>, vector<2x128xf32> -> vector<2x128xf32>
    %92 = arith.addf %87, %91 : vector<2x128xf32>
    %c2_93 = arith.constant 2 : index
    %c0_94 = arith.constant 0 : index
    %93 = tpu.strided_load %arg11[%c2_93, %c0_94] {strides = array<i32: 8, 1>} : memref<16x128xf32, #tpu.memory_space<vmem>>, vector<2x128xf32>
    %c2_95 = arith.constant 2 : index
    %c0_96 = arith.constant 0 : index
    %c0_97 = arith.constant 0 : index
    %94 = vector.load %arg5[%c2_95, %c0_96, %c0_97] : memref<6x128x128xf32, #tpu.memory_space<vmem>>, vector<1x128x128xf32>
    %95 = vector.shape_cast %94 : vector<1x128x128xf32> to vector<128x128xf32>
    %cst_98 = arith.constant dense<0.000000e+00> : vector<2x128xf32>
    %96 = tpu.matmul %93, %95, %cst_98 {dimension_numbers = #tpu.dot_dimension_numbers<[1], [0], [0], [1], [0, 0, 1, 1], [], []>} : vector<2x128xf32>, vector<128x128xf32>, vector<2x128xf32> -> vector<2x128xf32>
    %97 = arith.addf %92, %96 : vector<2x128xf32>
    %c3 = arith.constant 3 : index
    %c0_99 = arith.constant 0 : index
    %98 = tpu.strided_load %arg11[%c3, %c0_99] {strides = array<i32: 8, 1>} : memref<16x128xf32, #tpu.memory_space<vmem>>, vector<2x128xf32>
    %c3_100 = arith.constant 3 : index
    %c0_101 = arith.constant 0 : index
    %c0_102 = arith.constant 0 : index
    %99 = vector.load %arg5[%c3_100, %c0_101, %c0_102] : memref<6x128x128xf32, #tpu.memory_space<vmem>>, vector<1x128x128xf32>
    %100 = vector.shape_cast %99 : vector<1x128x128xf32> to vector<128x128xf32>
    %cst_103 = arith.constant dense<0.000000e+00> : vector<2x128xf32>
    %101 = tpu.matmul %98, %100, %cst_103 {dimension_numbers = #tpu.dot_dimension_numbers<[1], [0], [0], [1], [0, 0, 1, 1], [], []>} : vector<2x128xf32>, vector<128x128xf32>, vector<2x128xf32> -> vector<2x128xf32>
    %102 = arith.addf %97, %101 : vector<2x128xf32>
    %c4 = arith.constant 4 : index
    %c0_104 = arith.constant 0 : index
    %103 = tpu.strided_load %arg11[%c4, %c0_104] {strides = array<i32: 8, 1>} : memref<16x128xf32, #tpu.memory_space<vmem>>, vector<2x128xf32>
    %c4_105 = arith.constant 4 : index
    %c0_106 = arith.constant 0 : index
    %c0_107 = arith.constant 0 : index
    %104 = vector.load %arg5[%c4_105, %c0_106, %c0_107] : memref<6x128x128xf32, #tpu.memory_space<vmem>>, vector<1x128x128xf32>
    %105 = vector.shape_cast %104 : vector<1x128x128xf32> to vector<128x128xf32>
    %cst_108 = arith.constant dense<0.000000e+00> : vector<2x128xf32>
    %106 = tpu.matmul %103, %105, %cst_108 {dimension_numbers = #tpu.dot_dimension_numbers<[1], [0], [0], [1], [0, 0, 1, 1], [], []>} : vector<2x128xf32>, vector<128x128xf32>, vector<2x128xf32> -> vector<2x128xf32>
    %107 = arith.addf %102, %106 : vector<2x128xf32>
    %c5 = arith.constant 5 : index
    %c0_109 = arith.constant 0 : index
    %108 = tpu.strided_load %arg11[%c5, %c0_109] {strides = array<i32: 8, 1>} : memref<16x128xf32, #tpu.memory_space<vmem>>, vector<2x128xf32>
    %c5_110 = arith.constant 5 : index
    %c0_111 = arith.constant 0 : index
    %c0_112 = arith.constant 0 : index
    %109 = vector.load %arg5[%c5_110, %c0_111, %c0_112] : memref<6x128x128xf32, #tpu.memory_space<vmem>>, vector<1x128x128xf32>
    %110 = vector.shape_cast %109 : vector<1x128x128xf32> to vector<128x128xf32>
    %cst_113 = arith.constant dense<0.000000e+00> : vector<2x128xf32>
    %111 = tpu.matmul %108, %110, %cst_113 {dimension_numbers = #tpu.dot_dimension_numbers<[1], [0], [0], [1], [0, 0, 1, 1], [], []>} : vector<2x128xf32>, vector<128x128xf32>, vector<2x128xf32> -> vector<2x128xf32>
    %112 = arith.addf %107, %111 : vector<2x128xf32>
    %c0_114 = arith.constant 0 : index
    %c0_115 = arith.constant 0 : index
    %113 = vector.load %arg6[%c0_114, %c0_115] : memref<1x128xf32, #tpu.memory_space<vmem>>, vector<1x128xf32>
    %114 = vector.broadcast %113 : vector<1x128xf32> to vector<2x128xf32>
    %115 = arith.addf %112, %114 : vector<2x128xf32>
    %116 = math.tanh %115 : vector<2x128xf32>
    %c0_116 = arith.constant 0 : index
    %c0_117 = arith.constant 0 : index
    %117 = vector.load %arg7[%c0_116, %c0_117] : memref<128x128xf32, #tpu.memory_space<vmem>>, vector<128x128xf32>
    %cst_118 = arith.constant dense<0.000000e+00> : vector<2x128xf32>
    %118 = tpu.matmul %116, %117, %cst_118 {dimension_numbers = #tpu.dot_dimension_numbers<[1], [0], [0], [1], [0, 0, 1, 1], [], []>} : vector<2x128xf32>, vector<128x128xf32>, vector<2x128xf32> -> vector<2x128xf32>
    %c0_119 = arith.constant 0 : index
    %c0_120 = arith.constant 0 : index
    %119 = vector.load %arg8[%c0_119, %c0_120] : memref<1x128xf32, #tpu.memory_space<vmem>>, vector<1x128xf32>
    %120 = vector.broadcast %119 : vector<1x128xf32> to vector<2x128xf32>
    %121 = arith.addf %118, %120 : vector<2x128xf32>
    %c0_121 = arith.constant 0 : index
    %c0_122 = arith.constant 0 : index
    %122 = vector.load %arg9[%c0_121, %c0_122] : memref<2x128xf32, #tpu.memory_space<vmem>>, vector<2x128xf32>
    tpu.vector_store %arg9[%c0_121, %c0_122], %121 {strides = array<i32>} : memref<2x128xf32, #tpu.memory_space<vmem>>, vector<2x128xf32>,
    return
  }
}

</mosaic_0001>

<llo_original>
// kernel: forward.1
$region0: #{forward.1}
  #allocation0 [shape = 'u32[]', space=smem, size = 0x4, offset = 0x4, fixed_abs, tag = 'smem constant byte address 0x4 - core index']
  #allocation1 [shape = 'u32[72,128]{1,0:T(1,128)}', space=vmem, size = 0x9000, scoped, tag = 'internal scratch']
  #allocation2 [shape = 'f32[32,128]{1,0:T(8,128)}', space=vmem, size = 0x4000, scoped, tag = 'scratch operand']
  #allocation3 [shape = 'f32[16,128]{1,0:T(8,128)}', space=vmem, size = 0x2000, scoped, tag = 'scratch operand']
  %s0 = inlined_call_operand.vmem [shape: f32[32,128], index: 0, kind: input, shape index: {}]
  %s1 = inlined_call_operand.hbm [shape: f32[3,128,128], index: 1, kind: input, shape index: {}]
  %s2 = inlined_call_operand.vmem [shape: f32[1,128], index: 2, kind: input, shape index: {}]
  %s3 = inlined_call_operand.hbm [shape: f32[3,128,128], index: 3, kind: input, shape index: {}]
  %s4 = inlined_call_operand.vmem [shape: f32[1,128], index: 4, kind: input, shape index: {}]
  %s5 = inlined_call_operand.hbm [shape: f32[6,128,128], index: 5, kind: input, shape index: {}]
  %s6 = inlined_call_operand.vmem [shape: f32[1,128], index: 6, kind: input, shape index: {}]
  %s7 = inlined_call_operand.hbm [shape: f32[128,128], index: 7, kind: input, shape index: {}]
  %s8 = inlined_call_operand.vmem [shape: f32[1,128], index: 8, kind: input, shape index: {}]
  %s9 = inlined_call_operand.hbm [shape: f32[2,128], index: 9, kind: output, shape index: {}]
  %s10 = sld [smem:[#allocation0]]
  $region62: #{forward.1} parent=0
    _
  %s12 = ssub.s32 1, %s10
  %s13 = scalar_select 0, %s12, %s10
  $region1: #{forward.1} parent=0
    #allocation4 [shape = 'u8[196608]{0}', space=vmem, size = 0x30000, scoped, tag = 'input window, operand 1, single buffered']
    #allocation5 [shape = 's32[1]{0}', space=sflag, size = 0x4, scoped, tag = 'scoped memory for forward.1']
    #allocation6 [shape = 's32[1]{0}', space=sflag, size = 0x4, scoped, tag = 'scoped memory for forward.1']
    #allocation7 [shape = 'u8[196608]{0}', space=vmem, size = 0x30000, scoped, tag = 'input window, operand 3, single buffered']
    #allocation8 [shape = 's32[1]{0}', space=sflag, size = 0x4, scoped, tag = 'scoped memory for forward.1']
    #allocation9 [shape = 'u8[393216]{0}', space=vmem, size = 0x60000, scoped, tag = 'input window, operand 5, single buffered']
    #allocation10 [shape = 'u8[65536]{0}', space=vmem, size = 0x10000, scoped, tag = 'input window, operand 7, single buffered']
    #allocation11 [shape = 's32[1]{0}', space=sflag, size = 0x4, scoped, tag = 'scoped memory for forward.1']
    #allocation12 [shape = 'u8[1024]{0}', space=vmem, size = 0x400, scoped, tag = 'output window, operand 0, single buffered']
    %14 = vsyncpa [#allocation5], 0
    %15 = vsyncpa [#allocation8], 0
    %16 = vsyncpa [#allocation11], 0
    %17 = vsyncpa [#allocation6], 0
    // Predicated region
    $region2: #{forward.1} parent=1 // pred_check
      _
    $region3: #{forward.1} parent=1 // pred_check_branch
      %19 = sbr.rel (0) target = $region5
    $region4: #{forward.1} parent=1 // pred_region
      _
    $region5: #{forward.1} parent=1 // pred_fallthru
      _
    // Predicated region
    $region6: #{forward.1} parent=1 // pred_check
      _
    $region7: #{forward.1} parent=1 // pred_check_branch
      %21 = sbr.rel (0) target = $region9
    $region8: #{forward.1} parent=1 // pred_region
      %23 = vsyncadd [#allocation5], 0
      %s24 = sshll.u32 %s1, 4
      %s25 = int_to_ptr.hbm [resolvable:$true] %s24
      %s26 = sshll.u32 [#allocation4], 4
      %s27 = int_to_ptr.vmem [resolvable:$true] %s26
      %32 = dma.hbm_to_vmem [thread:$0]  %s25, 6144, %s27, [#allocation5], 128, 128, 8
    $region9: #{forward.1} parent=1 // pred_fallthru
      _
    // Predicated region
    $region10: #{forward.1} parent=1 // pred_check
      _
    $region11: #{forward.1} parent=1 // pred_check_branch
      %34 = sbr.rel (0) target = $region13
    $region12: #{forward.1} parent=1 // pred_region
      _
    $region13: #{forward.1} parent=1 // pred_fallthru
      _
    // Predicated region
    $region14: #{forward.1} parent=1 // pred_check
      _
    $region15: #{forward.1} parent=1 // pred_check_branch
      %36 = sbr.rel (0) target = $region17
    $region16: #{forward.1} parent=1 // pred_region
      %38 = vsyncadd [#allocation8], 0
      %s39 = sshll.u32 %s3, 4
      %s40 = int_to_ptr.hbm [resolvable:$true] %s39
      %s41 = sshll.u32 [#allocation7], 4
      %s42 = int_to_ptr.vmem [resolvable:$true] %s41
      %47 = dma.hbm_to_vmem [thread:$0]  %s40, 6144, %s42, [#allocation8], 128, 128, 8
    $region17: #{forward.1} parent=1 // pred_fallthru
      _
    // Predicated region
    $region18: #{forward.1} parent=1 // pred_check
      _
    $region19: #{forward.1} parent=1 // pred_check_branch
      %49 = sbr.rel (0) target = $region21
    $region20: #{forward.1} parent=1 // pred_region
      _
    $region21: #{forward.1} parent=1 // pred_fallthru
      _
    // Predicated region
    $region22: #{forward.1} parent=1 // pred_check
      _
    $region23: #{forward.1} parent=1 // pred_check_branch
      %51 = sbr.rel (0) target = $region25
    $region24: #{forward.1} parent=1 // pred_region
      %53 = vsyncadd [#allocation8], 0
      %s54 = sshll.u32 %s5, 4
      %s55 = int_to_ptr.hbm [resolvable:$true] %s54
      %s56 = sshll.u32 [#allocation9], 4
      %s57 = int_to_ptr.vmem [resolvable:$true] %s56
      %62 = dma.hbm_to_vmem [thread:$0]  %s55, 12288, %s57, [#allocation8], 128, 128, 8
    $region25: #{forward.1} parent=1 // pred_fallthru
      _
    // Predicated region
    $region26: #{forward.1} parent=1 // pred_check
      _
    $region27: #{forward.1} parent=1 // pred_check_branch
      %64 = sbr.rel (0) target = $region29
    $region28: #{forward.1} parent=1 // pred_region
      _
    $region29: #{forward.1} parent=1 // pred_fallthru
      _
    // Predicated region
    $region30: #{forward.1} parent=1 // pred_check
      _
    $region31: #{forward.1} parent=1 // pred_check_branch
      %66 = sbr.rel (0) target = $region33
    $region32: #{forward.1} parent=1 // pred_region
      %68 = vsyncadd [#allocation11], 0
      %s69 = sshll.u32 %s7, 4
      %s70 = int_to_ptr.hbm [resolvable:$true] %s69
      %s71 = sshll.u32 [#allocation10], 4
      %s72 = int_to_ptr.vmem [resolvable:$true] %s71
      %77 = dma.hbm_to_vmem [thread:$0]  %s70, 2048, %s72, [#allocation11], 128, 128, 8
    $region33: #{forward.1} parent=1 // pred_fallthru
      _
    // Predicated region
    $region34: #{forward.1} parent=1 // pred_check
      _
    $region35: #{forward.1} parent=1 // pred_check_branch
      %79 = sbr.rel (0) target = $region37
    $region36: #{forward.1} parent=1 // pred_region
      _
    $region37: #{forward.1} parent=1 // pred_fallthru
      _
    // Predicated region
    $region38: #{forward.1} parent=1 // pred_check
      _
    $region39: #{forward.1} parent=1 // pred_check_branch
      %81 = sbr.rel (0) target = $region41
    $region40: #{forward.1} parent=1 // pred_region
      %83 = dma.done [#allocation5], 6144
    $region41: #{forward.1} parent=1 // pred_fallthru
      _
    // Predicated region
    $region42: #{forward.1} parent=1 // pred_check
      _
    $region43: #{forward.1} parent=1 // pred_check_branch
      %85 = sbr.rel (0) target = $region45
    $region44: #{forward.1} parent=1 // pred_region
      %87 = dma.done [#allocation8], 6144
    $region45: #{forward.1} parent=1 // pred_fallthru
      _
    // Predicated region
    $region46: #{forward.1} parent=1 // pred_check
      _
    $region47: #{forward.1} parent=1 // pred_check_branch
      %89 = sbr.rel (0) target = $region49
    $region48: #{forward.1} parent=1 // pred_region
      %91 = dma.done [#allocation8], 12288
    $region49: #{forward.1} parent=1 // pred_fallthru
      _
    // Predicated region
    $region50: #{forward.1} parent=1 // pred_check
      _
    $region51: #{forward.1} parent=1 // pred_check_branch
      %93 = sbr.rel (0) target = $region53
    $region52: #{forward.1} parent=1 // pred_region
      %95 = dma.done [#allocation11], 2048
    $region53: #{forward.1} parent=1 // pred_fallthru
      _
    %v96 = vld [vmem:[%s2] sm:$0x1]
    %v97 = vld [vmem:[%s0] sm:$0xff]
    %v98 = vld [vmem:[%s0 + $0x8] sm:$0x3f]
    %v99 = vld [vmem:[#allocation4] sm:$0xff]
    %v100 = vld [vmem:[#allocation4 + $0x8] sm:$0xff]
    %v101 = vld [vmem:[#allocation4 + $0x10] sm:$0xff]
    %v102 = vld [vmem:[#allocation4 + $0x18] sm:$0xff]
    %v103 = vld [vmem:[#allocation4 + $0x20] sm:$0xff]
    %v104 = vld [vmem:[#allocation4 + $0x28] sm:$0xff]
    %v105 = vld [vmem:[#allocation4 + $0x30] sm:$0xff]
    %v106 = vld [vmem:[#allocation4 + $0x38] sm:$0xff]
    %v107 = vld [vmem:[#allocation4 + $0x40] sm:$0xff]
    %v108 = vld [vmem:[#allocation4 + $0x48] sm:$0xff]
    %v109 = vld [vmem:[#allocation4 + $0x50] sm:$0xff]
    %v110 = vld [vmem:[#allocation4 + $0x58] sm:$0xff]
    %v111 = vld [vmem:[#allocation4 + $0x60] sm:$0xff]
    %v112 = vld [vmem:[#allocation4 + $0x68] sm:$0xff]
    %v113 = vld [vmem:[#allocation4 + $0x70] sm:$0xff]
    %v114 = vld [vmem:[#allocation4 + $0x78] sm:$0xff]
    %v115 = vld [vmem:[%s0 + $0x1] sm:$0xff]
    %v116 = vld [vmem:[%s0 + $0x9] sm:$0x3f]
    %s117 = scalar_lea.vmem [#allocation4], 128
    %v118 = vld [vmem:[%s117] sm:$0xff]
    %v119 = vld [vmem:[%s117 + $0x8] sm:$0xff]
    %v120 = vld [vmem:[%s117 + $0x10] sm:$0xff]
    %v121 = vld [vmem:[%s117 + $0x18] sm:$0xff]
    %v122 = vld [vmem:[%s117 + $0x20] sm:$0xff]
    %v123 = vld [vmem:[%s117 + $0x28] sm:$0xff]
    %v124 = vld [vmem:[%s117 + $0x30] sm:$0xff]
    %v125 = vld [vmem:[%s117 + $0x38] sm:$0xff]
    %v126 = vld [vmem:[%s117 + $0x40] sm:$0xff]
    %v127 = vld [vmem:[%s117 + $0x48] sm:$0xff]
    %v128 = vld [vmem:[%s117 + $0x50] sm:$0xff]
    %v129 = vld [vmem:[%s117 + $0x58] sm:$0xff]
    %v130 = vld [vmem:[%s117 + $0x60] sm:$0xff]
    %v131 = vld [vmem:[%s117 + $0x68] sm:$0xff]
    %v132 = vld [vmem:[%s117 + $0x70] sm:$0xff]
    %v133 = vld [vmem:[%s117 + $0x78] sm:$0xff]
    %134 = vmatpush.msra.mxu0 %v133
    %135 = vmatpush.msra.mxu0 %v132
    %136 = vmatpush.msra.mxu0 %v131
    %137 = vmatpush.msra.mxu0 %v130
    %138 = vmatpush.msra.mxu0 %v129
    %139 = vmatpush.msra.mxu0 %v128
    %140 = vmatpush.msra.mxu0 %v127
    %141 = vmatpush.msra.mxu0 %v126
    %142 = vmatpush.msra.mxu0 %v125
    %143 = vmatpush.msra.mxu0 %v124
    %144 = vmatpush.msra.mxu0 %v123
    %145 = vmatpush.msra.mxu0 %v122
    %146 = vmatpush.msra.mxu0 %v121
    %147 = vmatpush.msra.mxu0 %v120
    %148 = vmatpush.msra.mxu0 %v119
    %149 = vmatpush.msra.mxu0 %v118
    %150 = vmatmul.f32.gmra.mxu0 %v115
    %v151 = vpop.f32.mrf.mxu0
    %v152 = vadd.f32 0.0, %v151
    %153 = vmatmul.f32.gmra.mxu0 %v116
    %v154 = vpop.f32.mrf.mxu0
    %v155 = vadd.f32 0.0, %v154
    %156 = vdwg.mxu0
    %157 = vmatpush.msra.mxu0 %v114
    %158 = vmatpush.msra.mxu0 %v113
    %159 = vmatpush.msra.mxu0 %v112
    %160 = vmatpush.msra.mxu0 %v111
    %161 = vmatpush.msra.mxu0 %v110
    %162 = vmatpush.msra.mxu0 %v109
    %163 = vmatpush.msra.mxu0 %v108
    %164 = vmatpush.msra.mxu0 %v107
    %165 = vmatpush.msra.mxu0 %v106
    %166 = vmatpush.msra.mxu0 %v105
    %167 = vmatpush.msra.mxu0 %v104
    %168 = vmatpush.msra.mxu0 %v103
    %169 = vmatpush.msra.mxu0 %v102
    %170 = vmatpush.msra.mxu0 %v101
    %171 = vmatpush.msra.mxu0 %v100
    %172 = vmatpush.msra.mxu0 %v99
    %173 = vmatmul.f32.gmra.mxu0 %v97
    %v174 = vpop.f32.mrf.mxu0
    %v175 = vadd.f32 %v152, %v174
    %176 = vmatmul.f32.gmra.mxu0 %v98
    %v177 = vpop.f32.mrf.mxu0
    %v178 = vadd.f32 %v155, %v177
    %179 = vdwg.mxu0
    %v180 = vld [vmem:[%s0 + $0x2] sm:$0xff]
    %v181 = vld [vmem:[%s0 + $0xa] sm:$0x3f]
    %s182 = scalar_lea.vmem [#allocation4], 256
    %v183 = vld [vmem:[%s182] sm:$0xff]
    %v184 = vld [vmem:[%s182 + $0x8] sm:$0xff]
    %v185 = vld [vmem:[%s182 + $0x10] sm:$0xff]
    %v186 = vld [vmem:[%s182 + $0x18] sm:$0xff]
    %v187 = vld [vmem:[%s182 + $0x20] sm:$0xff]
    %v188 = vld [vmem:[%s182 + $0x28] sm:$0xff]
    %v189 = vld [vmem:[%s182 + $0x30] sm:$0xff]
    %v190 = vld [vmem:[%s182 + $0x38] sm:$0xff]
    %v191 = vld [vmem:[%s182 + $0x40] sm:$0xff]
    %v192 = vld [vmem:[%s182 + $0x48] sm:$0xff]
    %v193 = vld [vmem:[%s182 + $0x50] sm:$0xff]
    %v194 = vld [vmem:[%s182 + $0x58] sm:$0xff]
    %v195 = vld [vmem:[%s182 + $0x60] sm:$0xff]
    %v196 = vld [vmem:[%s182 + $0x68] sm:$0xff]
    %v197 = vld [vmem:[%s182 + $0x70] sm:$0xff]
    %v198 = vld [vmem:[%s182 + $0x78] sm:$0xff]
    %199 = vmatpush.msra.mxu0 %v198
    %200 = vmatpush.msra.mxu0 %v197
    %201 = vmatpush.msra.mxu0 %v196
    %202 = vmatpush.msra.mxu0 %v195
    %203 = vmatpush.msra.mxu0 %v194
    %204 = vmatpush.msra.mxu0 %v193
    %205 = vmatpush.msra.mxu0 %v192
    %206 = vmatpush.msra.mxu0 %v191
    %207 = vmatpush.msra.mxu0 %v190
    %208 = vmatpush.msra.mxu0 %v189
    %209 = vmatpush.msra.mxu0 %v188
    %210 = vmatpush.msra.mxu0 %v187
    %211 = vmatpush.msra.mxu0 %v186
    %212 = vmatpush.msra.mxu0 %v185
    %213 = vmatpush.msra.mxu0 %v184
    %214 = vmatpush.msra.mxu0 %v183
    %215 = vmatmul.f32.gmra.mxu0 %v180
    %v216 = vpop.f32.mrf.mxu0
    %v217 = vadd.f32 0.0, %v216
    %218 = vmatmul.f32.gmra.mxu0 %v181
    %v219 = vpop.f32.mrf.mxu0
    %v220 = vadd.f32 0.0, %v219
    %221 = vdwg.mxu0
    %v222 = vadd.f32 %v175, %v217
    %v223 = vadd.f32 %v178, %v220
    %v225 = vperm.slane %v96, 0
    %v227 = vadd.f32 %v222, %v225
    %v228 = vadd.f32 %v223, %v225
    %v229 = vtanh.pop %v227
    %v230 = vtanh.pop %v228
    %231 = vst [vmem:[#allocation2] sm:$0xff] %v229
    %232 = vst [vmem:[#allocation2 + $0x8] sm:$0x3f] %v230
    %v233 = vld [vmem:[%s0 + $0x10] sm:$0xff]
    %v234 = vld [vmem:[%s0 + $0x18] sm:$0x3f]
    %v235 = vld [vmem:[#allocation4] sm:$0xff]
    %v236 = vld [vmem:[#allocation4 + $0x8] sm:$0xff]
    %v237 = vld [vmem:[#allocation4 + $0x10] sm:$0xff]
    %v238 = vld [vmem:[#allocation4 + $0x18] sm:$0xff]
    %v239 = vld [vmem:[#allocation4 + $0x20] sm:$0xff]
    %v240 = vld [vmem:[#allocation4 + $0x28] sm:$0xff]
    %v241 = vld [vmem:[#allocation4 + $0x30] sm:$0xff]
    %v242 = vld [vmem:[#allocation4 + $0x38] sm:$0xff]
    %v243 = vld [vmem:[#allocation4 + $0x40] sm:$0xff]
    %v244 = vld [vmem:[#allocation4 + $0x48] sm:$0xff]
    %v245 = vld [vmem:[#allocation4 + $0x50] sm:$0xff]
    %v246 = vld [vmem:[#allocation4 + $0x58] sm:$0xff]
    %v247 = vld [vmem:[#allocation4 + $0x60] sm:$0xff]
    %v248 = vld [vmem:[#allocation4 + $0x68] sm:$0xff]
    %v249 = vld [vmem:[#allocation4 + $0x70] sm:$0xff]
    %v250 = vld [vmem:[#allocation4 + $0x78] sm:$0xff]
    %v251 = vld [vmem:[%s0 + $0x11] sm:$0xff]
    %v252 = vld [vmem:[%s0 + $0x19] sm:$0x3f]
    %v253 = vld [vmem:[%s117] sm:$0xff]
    %v254 = vld [vmem:[%s117 + $0x8] sm:$0xff]
    %v255 = vld [vmem:[%s117 + $0x10] sm:$0xff]
    %v256 = vld [vmem:[%s117 + $0x18] sm:$0xff]
    %v257 = vld [vmem:[%s117 + $0x20] sm:$0xff]
    %v258 = vld [vmem:[%s117 + $0x28] sm:$0xff]
    %v259 = vld [vmem:[%s117 + $0x30] sm:$0xff]
    %v260 = vld [vmem:[%s117 + $0x38] sm:$0xff]
    %v261 = vld [vmem:[%s117 + $0x40] sm:$0xff]
    %v262 = vld [vmem:[%s117 + $0x48] sm:$0xff]
    %v263 = vld [vmem:[%s117 + $0x50] sm:$0xff]
    %v264 = vld [vmem:[%s117 + $0x58] sm:$0xff]
    %v265 = vld [vmem:[%s117 + $0x60] sm:$0xff]
    %v266 = vld [vmem:[%s117 + $0x68] sm:$0xff]
    %v267 = vld [vmem:[%s117 + $0x70] sm:$0xff]
    %v268 = vld [vmem:[%s117 + $0x78] sm:$0xff]
    %269 = vmatpush.msra.mxu0 %v268
    %270 = vmatpush.msra.mxu0 %v267
    %271 = vmatpush.msra.mxu0 %v266
    %272 = vmatpush.msra.mxu0 %v265
    %273 = vmatpush.msra.mxu0 %v264
    %274 = vmatpush.msra.mxu0 %v263
    %275 = vmatpush.msra.mxu0 %v262
    %276 = vmatpush.msra.mxu0 %v261
    %277 = vmatpush.msra.mxu0 %v260
    %278 = vmatpush.msra.mxu0 %v259
    %279 = vmatpush.msra.mxu0 %v258
    %280 = vmatpush.msra.mxu0 %v257
    %281 = vmatpush.msra.mxu0 %v256
    %282 = vmatpush.msra.mxu0 %v255
    %283 = vmatpush.msra.mxu0 %v254
    %284 = vmatpush.msra.mxu0 %v253
    %285 = vmatmul.f32.gmra.mxu0 %v251
    %v286 = vpop.f32.mrf.mxu0
    %v287 = vadd.f32 0.0, %v286
    %288 = vmatmul.f32.gmra.mxu0 %v252
    %v289 = vpop.f32.mrf.mxu0
    %v290 = vadd.f32 0.0, %v289
    %291 = vdwg.mxu0
    %292 = vmatpush.msra.mxu0 %v250
    %293 = vmatpush.msra.mxu0 %v249
    %294 = vmatpush.msra.mxu0 %v248
    %295 = vmatpush.msra.mxu0 %v247
    %296 = vmatpush.msra.mxu0 %v246
    %297 = vmatpush.msra.mxu0 %v245
    %298 = vmatpush.msra.mxu0 %v244
    %299 = vmatpush.msra.mxu0 %v243
    %300 = vmatpush.msra.mxu0 %v242
    %301 = vmatpush.msra.mxu0 %v241
    %302 = vmatpush.msra.mxu0 %v240
    %303 = vmatpush.msra.mxu0 %v239
    %304 = vmatpush.msra.mxu0 %v238
    %305 = vmatpush.msra.mxu0 %v237
    %306 = vmatpush.msra.mxu0 %v236
    %307 = vmatpush.msra.mxu0 %v235
    %308 = vmatmul.f32.gmra.mxu0 %v233
    %v309 = vpop.f32.mrf.mxu0
    %v310 = vadd.f32 %v287, %v309
    %311 = vmatmul.f32.gmra.mxu0 %v234
    %v312 = vpop.f32.mrf.mxu0
    %v313 = vadd.f32 %v290, %v312
    %314 = vdwg.mxu0
    %v315 = vld [vmem:[%s0 + $0x12] sm:$0xff]
    %v316 = vld [vmem:[%s0 + $0x1a] sm:$0x3f]
    %v317 = vld [vmem:[%s182] sm:$0xff]
    %v318 = vld [vmem:[%s182 + $0x8] sm:$0xff]
    %v319 = vld [vmem:[%s182 + $0x10] sm:$0xff]
    %v320 = vld [vmem:[%s182 + $0x18] sm:$0xff]
    %v321 = vld [vmem:[%s182 + $0x20] sm:$0xff]
    %v322 = vld [vmem:[%s182 + $0x28] sm:$0xff]
    %v323 = vld [vmem:[%s182 + $0x30] sm:$0xff]
    %v324 = vld [vmem:[%s182 + $0x38] sm:$0xff]
    %v325 = vld [vmem:[%s182 + $0x40] sm:$0xff]
    %v326 = vld [vmem:[%s182 + $0x48] sm:$0xff]
    %v327 = vld [vmem:[%s182 + $0x50] sm:$0xff]
    %v328 = vld [vmem:[%s182 + $0x58] sm:$0xff]
    %v329 = vld [vmem:[%s182 + $0x60] sm:$0xff]
    %v330 = vld [vmem:[%s182 + $0x68] sm:$0xff]
    %v331 = vld [vmem:[%s182 + $0x70] sm:$0xff]
    %v332 = vld [vmem:[%s182 + $0x78] sm:$0xff]
    %333 = vmatpush.msra.mxu0 %v332
    %334 = vmatpush.msra.mxu0 %v331
    %335 = vmatpush.msra.mxu0 %v330
    %336 = vmatpush.msra.mxu0 %v329
    %337 = vmatpush.msra.mxu0 %v328
    %338 = vmatpush.msra.mxu0 %v327
    %339 = vmatpush.msra.mxu0 %v326
    %340 = vmatpush.msra.mxu0 %v325
    %341 = vmatpush.msra.mxu0 %v324
    %342 = vmatpush.msra.mxu0 %v323
    %343 = vmatpush.msra.mxu0 %v322
    %344 = vmatpush.msra.mxu0 %v321
    %345 = vmatpush.msra.mxu0 %v320
    %346 = vmatpush.msra.mxu0 %v319
    %347 = vmatpush.msra.mxu0 %v318
    %348 = vmatpush.msra.mxu0 %v317
    %349 = vmatmul.f32.gmra.mxu0 %v315
    %v350 = vpop.f32.mrf.mxu0
    %v351 = vadd.f32 0.0, %v350
    %352 = vmatmul.f32.gmra.mxu0 %v316
    %v353 = vpop.f32.mrf.mxu0
    %v354 = vadd.f32 0.0, %v353
    %355 = vdwg.mxu0
    %v356 = vadd.f32 %v310, %v351
    %v357 = vadd.f32 %v313, %v354
    %v358 = vadd.f32 %v356, %v225
    %v359 = vadd.f32 %v357, %v225
    %v360 = vtanh.pop %v358
    %v361 = vtanh.pop %v359
    %362 = vst [vmem:[#allocation2 + $0x10] sm:$0xff] %v360
    %363 = vst [vmem:[#allocation2 + $0x18] sm:$0x3f] %v361
    %v364 = vld [vmem:[%s4] sm:$0x1]
    %v365 = vld [vmem:[#allocation2] ss:$2 sm:$0x3f]
    %v366 = vld [vmem:[#allocation7] sm:$0xff]
    %v367 = vld [vmem:[#allocation7 + $0x8] sm:$0xff]
    %v368 = vld [vmem:[#allocation7 + $0x10] sm:$0xff]
    %v369 = vld [vmem:[#allocation7 + $0x18] sm:$0xff]
    %v370 = vld [vmem:[#allocation7 + $0x20] sm:$0xff]
    %v371 = vld [vmem:[#allocation7 + $0x28] sm:$0xff]
    %v372 = vld [vmem:[#allocation7 + $0x30] sm:$0xff]
    %v373 = vld [vmem:[#allocation7 + $0x38] sm:$0xff]
    %v374 = vld [vmem:[#allocation7 + $0x40] sm:$0xff]
    %v375 = vld [vmem:[#allocation7 + $0x48] sm:$0xff]
    %v376 = vld [vmem:[#allocation7 + $0x50] sm:$0xff]
    %v377 = vld [vmem:[#allocation7 + $0x58] sm:$0xff]
    %v378 = vld [vmem:[#allocation7 + $0x60] sm:$0xff]
    %v379 = vld [vmem:[#allocation7 + $0x68] sm:$0xff]
    %v380 = vld [vmem:[#allocation7 + $0x70] sm:$0xff]
    %v381 = vld [vmem:[#allocation7 + $0x78] sm:$0xff]
    %s382 = scalar_lea.vmem [#allocation2], 1
    %v383 = vld [vmem:[%s382] ss:$2 sm:$0x3f]
    %s384 = scalar_lea.vmem [#allocation7], 128
    %v385 = vld [vmem:[%s384] sm:$0xff]
    %v386 = vld [vmem:[%s384 + $0x8] sm:$0xff]
    %v387 = vld [vmem:[%s384 + $0x10] sm:$0xff]
    %v388 = vld [vmem:[%s384 + $0x18] sm:$0xff]
    %v389 = vld [vmem:[%s384 + $0x20] sm:$0xff]
    %v390 = vld [vmem:[%s384 + $0x28] sm:$0xff]
    %v391 = vld [vmem:[%s384 + $0x30] sm:$0xff]
    %v392 = vld [vmem:[%s384 + $0x38] sm:$0xff]
    %v393 = vld [vmem:[%s384 + $0x40] sm:$0xff]
    %v394 = vld [vmem:[%s384 + $0x48] sm:$0xff]
    %v395 = vld [vmem:[%s384 + $0x50] sm:$0xff]
    %v396 = vld [vmem:[%s384 + $0x58] sm:$0xff]
    %v397 = vld [vmem:[%s384 + $0x60] sm:$0xff]
    %v398 = vld [vmem:[%s384 + $0x68] sm:$0xff]
    %v399 = vld [vmem:[%s384 + $0x70] sm:$0xff]
    %v400 = vld [vmem:[%s384 + $0x78] sm:$0xff]
    %401 = vmatpush.msra.mxu0 %v400
    %402 = vmatpush.msra.mxu0 %v399
    %403 = vmatpush.msra.mxu0 %v398
    %404 = vmatpush.msra.mxu0 %v397
    %405 = vmatpush.msra.mxu0 %v396
    %406 = vmatpush.msra.mxu0 %v395
    %407 = vmatpush.msra.mxu0 %v394
    %408 = vmatpush.msra.mxu0 %v393
    %409 = vmatpush.msra.mxu0 %v392
    %410 = vmatpush.msra.mxu0 %v391
    %411 = vmatpush.msra.mxu0 %v390
    %412 = vmatpush.msra.mxu0 %v389
    %413 = vmatpush.msra.mxu0 %v388
    %414 = vmatpush.msra.mxu0 %v387
    %415 = vmatpush.msra.mxu0 %v386
    %416 = vmatpush.msra.mxu0 %v385
    %417 = vmatmul.f32.gmra.mxu0 %v383
    %v418 = vpop.f32.mrf.mxu0
    %v419 = vadd.f32 0.0, %v418
    %420 = vdwg.mxu0
    %421 = vmatpush.msra.mxu0 %v381
    %422 = vmatpush.msra.mxu0 %v380
    %423 = vmatpush.msra.mxu0 %v379
    %424 = vmatpush.msra.mxu0 %v378
    %425 = vmatpush.msra.mxu0 %v377
    %426 = vmatpush.msra.mxu0 %v376
    %427 = vmatpush.msra.mxu0 %v375
    %428 = vmatpush.msra.mxu0 %v374
    %429 = vmatpush.msra.mxu0 %v373
    %430 = vmatpush.msra.mxu0 %v372
    %431 = vmatpush.msra.mxu0 %v371
    %432 = vmatpush.msra.mxu0 %v370
    %433 = vmatpush.msra.mxu0 %v369
    %434 = vmatpush.msra.mxu0 %v368
    %435 = vmatpush.msra.mxu0 %v367
    %436 = vmatpush.msra.mxu0 %v366
    %437 = vmatmul.f32.gmra.mxu0 %v365
    %v438 = vpop.f32.mrf.mxu0
    %v439 = vadd.f32 %v419, %v438
    %440 = vdwg.mxu0
    %s441 = scalar_lea.vmem [#allocation2], 2
    %v442 = vld [vmem:[%s441] ss:$2 sm:$0x3f]
    %s443 = scalar_lea.vmem [#allocation7], 256
    %v444 = vld [vmem:[%s443] sm:$0xff]
    %v445 = vld [vmem:[%s443 + $0x8] sm:$0xff]
    %v446 = vld [vmem:[%s443 + $0x10] sm:$0xff]
    %v447 = vld [vmem:[%s443 + $0x18] sm:$0xff]
    %v448 = vld [vmem:[%s443 + $0x20] sm:$0xff]
    %v449 = vld [vmem:[%s443 + $0x28] sm:$0xff]
    %v450 = vld [vmem:[%s443 + $0x30] sm:$0xff]
    %v451 = vld [vmem:[%s443 + $0x38] sm:$0xff]
    %v452 = vld [vmem:[%s443 + $0x40] sm:$0xff]
    %v453 = vld [vmem:[%s443 + $0x48] sm:$0xff]
    %v454 = vld [vmem:[%s443 + $0x50] sm:$0xff]
    %v455 = vld [vmem:[%s443 + $0x58] sm:$0xff]
    %v456 = vld [vmem:[%s443 + $0x60] sm:$0xff]
    %v457 = vld [vmem:[%s443 + $0x68] sm:$0xff]
    %v458 = vld [vmem:[%s443 + $0x70] sm:$0xff]
    %v459 = vld [vmem:[%s443 + $0x78] sm:$0xff]
    %460 = vmatpush.msra.mxu0 %v459
    %461 = vmatpush.msra.mxu0 %v458
    %462 = vmatpush.msra.mxu0 %v457
    %463 = vmatpush.msra.mxu0 %v456
    %464 = vmatpush.msra.mxu0 %v455
    %465 = vmatpush.msra.mxu0 %v454
    %466 = vmatpush.msra.mxu0 %v453
    %467 = vmatpush.msra.mxu0 %v452
    %468 = vmatpush.msra.mxu0 %v451
    %469 = vmatpush.msra.mxu0 %v450
    %470 = vmatpush.msra.mxu0 %v449
    %471 = vmatpush.msra.mxu0 %v448
    %472 = vmatpush.msra.mxu0 %v447
    %473 = vmatpush.msra.mxu0 %v446
    %474 = vmatpush.msra.mxu0 %v445
    %475 = vmatpush.msra.mxu0 %v444
    %476 = vmatmul.f32.gmra.mxu0 %v442
    %v477 = vpop.f32.mrf.mxu0
    %v478 = vadd.f32 0.0, %v477
    %479 = vdwg.mxu0
    %v480 = vadd.f32 %v439, %v478
    %v482 = vperm.slane %v364, 0
    %v484 = vadd.f32 %v480, %v482
    %v485 = vtanh.pop %v484
    %486 = vst [vmem:[#allocation3] sm:$0x3f] %v485
    %s487 = scalar_lea.vmem [#allocation2], 16
    %v488 = vld [vmem:[%s487] ss:$2 sm:$0x3f]
    %v489 = vld [vmem:[#allocation7] sm:$0xff]
    %v490 = vld [vmem:[#allocation7 + $0x8] sm:$0xff]
    %v491 = vld [vmem:[#allocation7 + $0x10] sm:$0xff]
    %v492 = vld [vmem:[#allocation7 + $0x18] sm:$0xff]
    %v493 = vld [vmem:[#allocation7 + $0x20] sm:$0xff]
    %v494 = vld [vmem:[#allocation7 + $0x28] sm:$0xff]
    %v495 = vld [vmem:[#allocation7 + $0x30] sm:$0xff]
    %v496 = vld [vmem:[#allocation7 + $0x38] sm:$0xff]
    %v497 = vld [vmem:[#allocation7 + $0x40] sm:$0xff]
    %v498 = vld [vmem:[#allocation7 + $0x48] sm:$0xff]
    %v499 = vld [vmem:[#allocation7 + $0x50] sm:$0xff]
    %v500 = vld [vmem:[#allocation7 + $0x58] sm:$0xff]
    %v501 = vld [vmem:[#allocation7 + $0x60] sm:$0xff]
    %v502 = vld [vmem:[#allocation7 + $0x68] sm:$0xff]
    %v503 = vld [vmem:[#allocation7 + $0x70] sm:$0xff]
    %v504 = vld [vmem:[#allocation7 + $0x78] sm:$0xff]
    %s505 = scalar_lea.vmem [#allocation2], 17
    %v506 = vld [vmem:[%s505] ss:$2 sm:$0x3f]
    %v507 = vld [vmem:[%s384] sm:$0xff]
    %v508 = vld [vmem:[%s384 + $0x8] sm:$0xff]
    %v509 = vld [vmem:[%s384 + $0x10] sm:$0xff]
    %v510 = vld [vmem:[%s384 + $0x18] sm:$0xff]
    %v511 = vld [vmem:[%s384 + $0x20] sm:$0xff]
    %v512 = vld [vmem:[%s384 + $0x28] sm:$0xff]
    %v513 = vld [vmem:[%s384 + $0x30] sm:$0xff]
    %v514 = vld [vmem:[%s384 + $0x38] sm:$0xff]
    %v515 = vld [vmem:[%s384 + $0x40] sm:$0xff]
    %v516 = vld [vmem:[%s384 + $0x48] sm:$0xff]
    %v517 = vld [vmem:[%s384 + $0x50] sm:$0xff]
    %v518 = vld [vmem:[%s384 + $0x58] sm:$0xff]
    %v519 = vld [vmem:[%s384 + $0x60] sm:$0xff]
    %v520 = vld [vmem:[%s384 + $0x68] sm:$0xff]
    %v521 = vld [vmem:[%s384 + $0x70] sm:$0xff]
    %v522 = vld [vmem:[%s384 + $0x78] sm:$0xff]
    %523 = vmatpush.msra.mxu0 %v522
    %524 = vmatpush.msra.mxu0 %v521
    %525 = vmatpush.msra.mxu0 %v520
    %526 = vmatpush.msra.mxu0 %v519
    %527 = vmatpush.msra.mxu0 %v518
    %528 = vmatpush.msra.mxu0 %v517
    %529 = vmatpush.msra.mxu0 %v516
    %530 = vmatpush.msra.mxu0 %v515
    %531 = vmatpush.msra.mxu0 %v514
    %532 = vmatpush.msra.mxu0 %v513
    %533 = vmatpush.msra.mxu0 %v512
    %534 = vmatpush.msra.mxu0 %v511
    %535 = vmatpush.msra.mxu0 %v510
    %536 = vmatpush.msra.mxu0 %v509
    %537 = vmatpush.msra.mxu0 %v508
    %538 = vmatpush.msra.mxu0 %v507
    %539 = vmatmul.f32.gmra.mxu0 %v506
    %v540 = vpop.f32.mrf.mxu0
    %v541 = vadd.f32 0.0, %v540
    %542 = vdwg.mxu0
    %543 = vmatpush.msra.mxu0 %v504
    %544 = vmatpush.msra.mxu0 %v503
    %545 = vmatpush.msra.mxu0 %v502
    %546 = vmatpush.msra.mxu0 %v501
    %547 = vmatpush.msra.mxu0 %v500
    %548 = vmatpush.msra.mxu0 %v499
    %549 = vmatpush.msra.mxu0 %v498
    %550 = vmatpush.msra.mxu0 %v497
    %551 = vmatpush.msra.mxu0 %v496
    %552 = vmatpush.msra.mxu0 %v495
    %553 = vmatpush.msra.mxu0 %v494
    %554 = vmatpush.msra.mxu0 %v493
    %555 = vmatpush.msra.mxu0 %v492
    %556 = vmatpush.msra.mxu0 %v491
    %557 = vmatpush.msra.mxu0 %v490
    %558 = vmatpush.msra.mxu0 %v489
    %559 = vmatmul.f32.gmra.mxu0 %v488
    %v560 = vpop.f32.mrf.mxu0
    %v561 = vadd.f32 %v541, %v560
    %562 = vdwg.mxu0
    %s563 = scalar_lea.vmem [#allocation2], 18
    %v564 = vld [vmem:[%s563] ss:$2 sm:$0x3f]
    %v565 = vld [vmem:[%s443] sm:$0xff]
    %v566 = vld [vmem:[%s443 + $0x8] sm:$0xff]
    %v567 = vld [vmem:[%s443 + $0x10] sm:$0xff]
    %v568 = vld [vmem:[%s443 + $0x18] sm:$0xff]
    %v569 = vld [vmem:[%s443 + $0x20] sm:$0xff]
    %v570 = vld [vmem:[%s443 + $0x28] sm:$0xff]
    %v571 = vld [vmem:[%s443 + $0x30] sm:$0xff]
    %v572 = vld [vmem:[%s443 + $0x38] sm:$0xff]
    %v573 = vld [vmem:[%s443 + $0x40] sm:$0xff]
    %v574 = vld [vmem:[%s443 + $0x48] sm:$0xff]
    %v575 = vld [vmem:[%s443 + $0x50] sm:$0xff]
    %v576 = vld [vmem:[%s443 + $0x58] sm:$0xff]
    %v577 = vld [vmem:[%s443 + $0x60] sm:$0xff]
    %v578 = vld [vmem:[%s443 + $0x68] sm:$0xff]
    %v579 = vld [vmem:[%s443 + $0x70] sm:$0xff]
    %v580 = vld [vmem:[%s443 + $0x78] sm:$0xff]
    %581 = vmatpush.msra.mxu0 %v580
    %582 = vmatpush.msra.mxu0 %v579
    %583 = vmatpush.msra.mxu0 %v578
    %584 = vmatpush.msra.mxu0 %v577
    %585 = vmatpush.msra.mxu0 %v576
    %586 = vmatpush.msra.mxu0 %v575
    %587 = vmatpush.msra.mxu0 %v574
    %588 = vmatpush.msra.mxu0 %v573
    %589 = vmatpush.msra.mxu0 %v572
    %590 = vmatpush.msra.mxu0 %v571
    %591 = vmatpush.msra.mxu0 %v570
    %592 = vmatpush.msra.mxu0 %v569
    %593 = vmatpush.msra.mxu0 %v568
    %594 = vmatpush.msra.mxu0 %v567
    %595 = vmatpush.msra.mxu0 %v566
    %596 = vmatpush.msra.mxu0 %v565
    %597 = vmatmul.f32.gmra.mxu0 %v564
    %v598 = vpop.f32.mrf.mxu0
    %v599 = vadd.f32 0.0, %v598
    %600 = vdwg.mxu0
    %v601 = vadd.f32 %v561, %v599
    %v602 = vadd.f32 %v601, %v482
    %v603 = vtanh.pop %v602
    %604 = vst [vmem:[#allocation3 + $0x8] sm:$0x3f] %v603
    %v605 = vld [vmem:[#allocation3] ss:$8 sm:$0x3]
    %v606 = vld [vmem:[#allocation9] sm:$0xff]
    %v607 = vld [vmem:[#allocation9 + $0x8] sm:$0xff]
    %v608 = vld [vmem:[#allocation9 + $0x10] sm:$0xff]
    %v609 = vld [vmem:[#allocation9 + $0x18] sm:$0xff]
    %v610 = vld [vmem:[#allocation9 + $0x20] sm:$0xff]
    %v611 = vld [vmem:[#allocation9 + $0x28] sm:$0xff]
    %v612 = vld [vmem:[#allocation9 + $0x30] sm:$0xff]
    %v613 = vld [vmem:[#allocation9 + $0x38] sm:$0xff]
    %v614 = vld [vmem:[#allocation9 + $0x40] sm:$0xff]
    %v615 = vld [vmem:[#allocation9 + $0x48] sm:$0xff]
    %v616 = vld [vmem:[#allocation9 + $0x50] sm:$0xff]
    %v617 = vld [vmem:[#allocation9 + $0x58] sm:$0xff]
    %v618 = vld [vmem:[#allocation9 + $0x60] sm:$0xff]
    %v619 = vld [vmem:[#allocation9 + $0x68] sm:$0xff]
    %v620 = vld [vmem:[#allocation9 + $0x70] sm:$0xff]
    %v621 = vld [vmem:[#allocation9 + $0x78] sm:$0xff]
    %s622 = scalar_lea.vmem [#allocation3], 1
    %v623 = vld [vmem:[%s622] ss:$8 sm:$0x3]
    %s624 = scalar_lea.vmem [#allocation9], 128
    %v625 = vld [vmem:[%s624] sm:$0xff]
    %v626 = vld [vmem:[%s624 + $0x8] sm:$0xff]
    %v627 = vld [vmem:[%s624 + $0x10] sm:$0xff]
    %v628 = vld [vmem:[%s624 + $0x18] sm:$0xff]
    %v629 = vld [vmem:[%s624 + $0x20] sm:$0xff]
    %v630 = vld [vmem:[%s624 + $0x28] sm:$0xff]
    %v631 = vld [vmem:[%s624 + $0x30] sm:$0xff]
    %v632 = vld [vmem:[%s624 + $0x38] sm:$0xff]
    %v633 = vld [vmem:[%s624 + $0x40] sm:$0xff]
    %v634 = vld [vmem:[%s624 + $0x48] sm:$0xff]
    %v635 = vld [vmem:[%s624 + $0x50] sm:$0xff]
    %v636 = vld [vmem:[%s624 + $0x58] sm:$0xff]
    %v637 = vld [vmem:[%s624 + $0x60] sm:$0xff]
    %v638 = vld [vmem:[%s624 + $0x68] sm:$0xff]
    %v639 = vld [vmem:[%s624 + $0x70] sm:$0xff]
    %v640 = vld [vmem:[%s624 + $0x78] sm:$0xff]
    %641 = vmatpush.msra.mxu0 %v640
    %642 = vmatpush.msra.mxu0 %v639
    %643 = vmatpush.msra.mxu0 %v638
    %644 = vmatpush.msra.mxu0 %v637
    %645 = vmatpush.msra.mxu0 %v636
    %646 = vmatpush.msra.mxu0 %v635
    %647 = vmatpush.msra.mxu0 %v634
    %648 = vmatpush.msra.mxu0 %v633
    %649 = vmatpush.msra.mxu0 %v632
    %650 = vmatpush.msra.mxu0 %v631
    %651 = vmatpush.msra.mxu0 %v630
    %652 = vmatpush.msra.mxu0 %v629
    %653 = vmatpush.msra.mxu0 %v628
    %654 = vmatpush.msra.mxu0 %v627
    %655 = vmatpush.msra.mxu0 %v626
    %656 = vmatpush.msra.mxu0 %v625
    %657 = vmatmul.f32.gmra.mxu0 %v623
    %v658 = vpop.f32.mrf.mxu0
    %v659 = vadd.f32 0.0, %v658
    %660 = vdwg.mxu0
    %661 = vmatpush.msra.mxu0 %v621
    %662 = vmatpush.msra.mxu0 %v620
    %663 = vmatpush.msra.mxu0 %v619
    %664 = vmatpush.msra.mxu0 %v618
    %665 = vmatpush.msra.mxu0 %v617
    %666 = vmatpush.msra.mxu0 %v616
    %667 = vmatpush.msra.mxu0 %v615
    %668 = vmatpush.msra.mxu0 %v614
    %669 = vmatpush.msra.mxu0 %v613
    %670 = vmatpush.msra.mxu0 %v612
    %671 = vmatpush.msra.mxu0 %v611
    %672 = vmatpush.msra.mxu0 %v610
    %673 = vmatpush.msra.mxu0 %v609
    %674 = vmatpush.msra.mxu0 %v608
    %675 = vmatpush.msra.mxu0 %v607
    %676 = vmatpush.msra.mxu0 %v606
    %677 = vmatmul.f32.gmra.mxu0 %v605
    %v678 = vpop.f32.mrf.mxu0
    %v679 = vadd.f32 %v659, %v678
    %680 = vdwg.mxu0
    %s681 = scalar_lea.vmem [#allocation3], 2
    %v682 = vld [vmem:[%s681] ss:$8 sm:$0x3]
    %s683 = scalar_lea.vmem [#allocation9], 256
    %v684 = vld [vmem:[%s683] sm:$0xff]
    %v685 = vld [vmem:[%s683 + $0x8] sm:$0xff]
    %v686 = vld [vmem:[%s683 + $0x10] sm:$0xff]
    %v687 = vld [vmem:[%s683 + $0x18] sm:$0xff]
    %v688 = vld [vmem:[%s683 + $0x20] sm:$0xff]
    %v689 = vld [vmem:[%s683 + $0x28] sm:$0xff]
    %v690 = vld [vmem:[%s683 + $0x30] sm:$0xff]
    %v691 = vld [vmem:[%s683 + $0x38] sm:$0xff]
    %v692 = vld [vmem:[%s683 + $0x40] sm:$0xff]
    %v693 = vld [vmem:[%s683 + $0x48] sm:$0xff]
    %v694 = vld [vmem:[%s683 + $0x50] sm:$0xff]
    %v695 = vld [vmem:[%s683 + $0x58] sm:$0xff]
    %v696 = vld [vmem:[%s683 + $0x60] sm:$0xff]
    %v697 = vld [vmem:[%s683 + $0x68] sm:$0xff]
    %v698 = vld [vmem:[%s683 + $0x70] sm:$0xff]
    %v699 = vld [vmem:[%s683 + $0x78] sm:$0xff]
    %700 = vmatpush.msra.mxu0 %v699
    %701 = vmatpush.msra.mxu0 %v698
    %702 = vmatpush.msra.mxu0 %v697
    %703 = vmatpush.msra.mxu0 %v696
    %704 = vmatpush.msra.mxu0 %v695
    %705 = vmatpush.msra.mxu0 %v694
    %706 = vmatpush.msra.mxu0 %v693
    %707 = vmatpush.msra.mxu0 %v692
    %708 = vmatpush.msra.mxu0 %v691
    %709 = vmatpush.msra.mxu0 %v690
    %710 = vmatpush.msra.mxu0 %v689
    %711 = vmatpush.msra.mxu0 %v688
    %712 = vmatpush.msra.mxu0 %v687
    %713 = vmatpush.msra.mxu0 %v686
    %714 = vmatpush.msra.mxu0 %v685
    %715 = vmatpush.msra.mxu0 %v684
    %716 = vmatmul.f32.gmra.mxu0 %v682
    %v717 = vpop.f32.mrf.mxu0
    %v718 = vadd.f32 0.0, %v717
    %719 = vdwg.mxu0
    %v720 = vadd.f32 %v679, %v718
    %s721 = scalar_lea.vmem [#allocation3], 3
    %v722 = vld [vmem:[%s721] ss:$8 sm:$0x3]
    %s723 = scalar_lea.vmem [#allocation9], 384
    %v724 = vld [vmem:[%s723] sm:$0xff]
    %v725 = vld [vmem:[%s723 + $0x8] sm:$0xff]
    %v726 = vld [vmem:[%s723 + $0x10] sm:$0xff]
    %v727 = vld [vmem:[%s723 + $0x18] sm:$0xff]
    %v728 = vld [vmem:[%s723 + $0x20] sm:$0xff]
    %v729 = vld [vmem:[%s723 + $0x28] sm:$0xff]
    %v730 = vld [vmem:[%s723 + $0x30] sm:$0xff]
    %v731 = vld [vmem:[%s723 + $0x38] sm:$0xff]
    %v732 = vld [vmem:[%s723 + $0x40] sm:$0xff]
    %v733 = vld [vmem:[%s723 + $0x48] sm:$0xff]
    %v734 = vld [vmem:[%s723 + $0x50] sm:$0xff]
    %v735 = vld [vmem:[%s723 + $0x58] sm:$0xff]
    %v736 = vld [vmem:[%s723 + $0x60] sm:$0xff]
    %v737 = vld [vmem:[%s723 + $0x68] sm:$0xff]
    %v738 = vld [vmem:[%s723 + $0x70] sm:$0xff]
    %v739 = vld [vmem:[%s723 + $0x78] sm:$0xff]
    %740 = vmatpush.msra.mxu0 %v739
    %741 = vmatpush.msra.mxu0 %v738
    %742 = vmatpush.msra.mxu0 %v737
    %743 = vmatpush.msra.mxu0 %v736
    %744 = vmatpush.msra.mxu0 %v735
    %745 = vmatpush.msra.mxu0 %v734
    %746 = vmatpush.msra.mxu0 %v733
    %747 = vmatpush.msra.mxu0 %v732
    %748 = vmatpush.msra.mxu0 %v731
    %749 = vmatpush.msra.mxu0 %v730
    %750 = vmatpush.msra.mxu0 %v729
    %751 = vmatpush.msra.mxu0 %v728
    %752 = vmatpush.msra.mxu0 %v727
    %753 = vmatpush.msra.mxu0 %v726
    %754 = vmatpush.msra.mxu0 %v725
    %755 = vmatpush.msra.mxu0 %v724
    %756 = vmatmul.f32.gmra.mxu0 %v722
    %v757 = vpop.f32.mrf.mxu0
    %v758 = vadd.f32 0.0, %v757
    %759 = vdwg.mxu0
    %v760 = vadd.f32 %v720, %v758
    %s761 = scalar_lea.vmem [#allocation3], 4
    %v762 = vld [vmem:[%s761] ss:$8 sm:$0x3]
    %s763 = scalar_lea.vmem [#allocation9], 512
    %v764 = vld [vmem:[%s763] sm:$0xff]
    %v765 = vld [vmem:[%s763 + $0x8] sm:$0xff]
    %v766 = vld [vmem:[%s763 + $0x10] sm:$0xff]
    %v767 = vld [vmem:[%s763 + $0x18] sm:$0xff]
    %v768 = vld [vmem:[%s763 + $0x20] sm:$0xff]
    %v769 = vld [vmem:[%s763 + $0x28] sm:$0xff]
    %v770 = vld [vmem:[%s763 + $0x30] sm:$0xff]
    %v771 = vld [vmem:[%s763 + $0x38] sm:$0xff]
    %v772 = vld [vmem:[%s763 + $0x40] sm:$0xff]
    %v773 = vld [vmem:[%s763 + $0x48] sm:$0xff]
    %v774 = vld [vmem:[%s763 + $0x50] sm:$0xff]
    %v775 = vld [vmem:[%s763 + $0x58] sm:$0xff]
    %v776 = vld [vmem:[%s763 + $0x60] sm:$0xff]
    %v777 = vld [vmem:[%s763 + $0x68] sm:$0xff]
    %v778 = vld [vmem:[%s763 + $0x70] sm:$0xff]
    %v779 = vld [vmem:[%s763 + $0x78] sm:$0xff]
    %780 = vmatpush.msra.mxu0 %v779
    %781 = vmatpush.msra.mxu0 %v778
    %782 = vmatpush.msra.mxu0 %v777
    %783 = vmatpush.msra.mxu0 %v776
    %784 = vmatpush.msra.mxu0 %v775
    %785 = vmatpush.msra.mxu0 %v774
    %786 = vmatpush.msra.mxu0 %v773
    %787 = vmatpush.msra.mxu0 %v772
    %788 = vmatpush.msra.mxu0 %v771
    %789 = vmatpush.msra.mxu0 %v770
    %790 = vmatpush.msra.mxu0 %v769
    %791 = vmatpush.msra.mxu0 %v768
    %792 = vmatpush.msra.mxu0 %v767
    %793 = vmatpush.msra.mxu0 %v766
    %794 = vmatpush.msra.mxu0 %v765
    %795 = vmatpush.msra.mxu0 %v764
    %796 = vmatmul.f32.gmra.mxu0 %v762
    %v797 = vpop.f32.mrf.mxu0
    %v798 = vadd.f32 0.0, %v797
    %799 = vdwg.mxu0
    %v800 = vadd.f32 %v760, %v798
    %s801 = scalar_lea.vmem [#allocation3], 5
    %v802 = vld [vmem:[%s801] ss:$8 sm:$0x3]
    %s803 = scalar_lea.vmem [#allocation9], 640
    %v804 = vld [vmem:[%s803] sm:$0xff]
    %v805 = vld [vmem:[%s803 + $0x8] sm:$0xff]
    %v806 = vld [vmem:[%s803 + $0x10] sm:$0xff]
    %v807 = vld [vmem:[%s803 + $0x18] sm:$0xff]
    %v808 = vld [vmem:[%s803 + $0x20] sm:$0xff]
    %v809 = vld [vmem:[%s803 + $0x28] sm:$0xff]
    %v810 = vld [vmem:[%s803 + $0x30] sm:$0xff]
    %v811 = vld [vmem:[%s803 + $0x38] sm:$0xff]
    %v812 = vld [vmem:[%s803 + $0x40] sm:$0xff]
    %v813 = vld [vmem:[%s803 + $0x48] sm:$0xff]
    %v814 = vld [vmem:[%s803 + $0x50] sm:$0xff]
    %v815 = vld [vmem:[%s803 + $0x58] sm:$0xff]
    %v816 = vld [vmem:[%s803 + $0x60] sm:$0xff]
    %v817 = vld [vmem:[%s803 + $0x68] sm:$0xff]
    %v818 = vld [vmem:[%s803 + $0x70] sm:$0xff]
    %v819 = vld [vmem:[%s803 + $0x78] sm:$0xff]
    %820 = vmatpush.msra.mxu0 %v819
    %821 = vmatpush.msra.mxu0 %v818
    %822 = vmatpush.msra.mxu0 %v817
    %823 = vmatpush.msra.mxu0 %v816
    %824 = vmatpush.msra.mxu0 %v815
    %825 = vmatpush.msra.mxu0 %v814
    %826 = vmatpush.msra.mxu0 %v813
    %827 = vmatpush.msra.mxu0 %v812
    %828 = vmatpush.msra.mxu0 %v811
    %829 = vmatpush.msra.mxu0 %v810
    %830 = vmatpush.msra.mxu0 %v809
    %831 = vmatpush.msra.mxu0 %v808
    %832 = vmatpush.msra.mxu0 %v807
    %833 = vmatpush.msra.mxu0 %v806
    %834 = vmatpush.msra.mxu0 %v805
    %835 = vmatpush.msra.mxu0 %v804
    %836 = vmatmul.f32.gmra.mxu0 %v802
    %v837 = vpop.f32.mrf.mxu0
    %v838 = vadd.f32 0.0, %v837
    %839 = vdwg.mxu0
    %v840 = vadd.f32 %v800, %v838
    %v841 = vld [vmem:[%s6] sm:$0x1]
    %v843 = vperm.slane %v841, 0
    %v845 = vadd.f32 %v840, %v843
    %v846 = vtanh.pop %v845
    %v847 = vld [vmem:[#allocation10] sm:$0xff]
    %v848 = vld [vmem:[#allocation10 + $0x8] sm:$0xff]
    %v849 = vld [vmem:[#allocation10 + $0x10] sm:$0xff]
    %v850 = vld [vmem:[#allocation10 + $0x18] sm:$0xff]
    %v851 = vld [vmem:[#allocation10 + $0x20] sm:$0xff]
    %v852 = vld [vmem:[#allocation10 + $0x28] sm:$0xff]
    %v853 = vld [vmem:[#allocation10 + $0x30] sm:$0xff]
    %v854 = vld [vmem:[#allocation10 + $0x38] sm:$0xff]
    %v855 = vld [vmem:[#allocation10 + $0x40] sm:$0xff]
    %v856 = vld [vmem:[#allocation10 + $0x48] sm:$0xff]
    %v857 = vld [vmem:[#allocation10 + $0x50] sm:$0xff]
    %v858 = vld [vmem:[#allocation10 + $0x58] sm:$0xff]
    %v859 = vld [vmem:[#allocation10 + $0x60] sm:$0xff]
    %v860 = vld [vmem:[#allocation10 + $0x68] sm:$0xff]
    %v861 = vld [vmem:[#allocation10 + $0x70] sm:$0xff]
    %v862 = vld [vmem:[#allocation10 + $0x78] sm:$0xff]
    %v863 = vld [vmem:[%s8] sm:$0x1]
    %v865 = vperm.slane %v863, 0
    %867 = vmatpush.msra.mxu0 %v862
    %868 = vmatpush.msra.mxu0 %v861
    %869 = vmatpush.msra.mxu0 %v860
    %870 = vmatpush.msra.mxu0 %v859
    %871 = vmatpush.msra.mxu0 %v858
    %872 = vmatpush.msra.mxu0 %v857
    %873 = vmatpush.msra.mxu0 %v856
    %874 = vmatpush.msra.mxu0 %v855
    %875 = vmatpush.msra.mxu0 %v854
    %876 = vmatpush.msra.mxu0 %v853
    %877 = vmatpush.msra.mxu0 %v852
    %878 = vmatpush.msra.mxu0 %v851
    %879 = vmatpush.msra.mxu0 %v850
    %880 = vmatpush.msra.mxu0 %v849
    %881 = vmatpush.msra.mxu0 %v848
    %882 = vmatpush.msra.mxu0 %v847
    %883 = vmatmul.f32.gmra.mxu0 %v846
    %v884 = vpop.f32.mrf.mxu0
    %v885 = vadd.f32 %v865, %v884
    %886 = vdwg.mxu0
    %887 = vst [vmem:[#allocation12] sm:$0x3] %v885
    // Predicated region
    $region54: #{forward.1} parent=1 // pred_check
      _
    $region55: #{forward.1} parent=1 // pred_check_branch
      %889 = sbr.rel (0) target = $region57
    $region56: #{forward.1} parent=1 // pred_region
      %891 = vsyncadd [#allocation6], 0
      %s893 = sshll.u32 [#allocation12], 4
      %s894 = int_to_ptr.vmem [resolvable:$true] %s893
      %s895 = sshll.u32 %s9, 4
      %s896 = int_to_ptr.hbm [resolvable:$true] %s895
      %898 = dma.vmem_to_hbm [thread:$0]  %s894, 32, %s896, [#allocation6]
    $region57: #{forward.1} parent=1 // pred_fallthru
      _
    // Predicated region
    $region58: #{forward.1} parent=1 // pred_check
      _
    $region59: #{forward.1} parent=1 // pred_check_branch
      %900 = sbr.rel (0) target = $region61
    $region60: #{forward.1} parent=1 // pred_region
      %902 = dma.done [#allocation6], 32
    $region61: #{forward.1} parent=1 // pred_fallthru
      _
    %903 = vsyncpa [#allocation5], 1
    %904 = vsyncpa [#allocation8], 1
    %905 = vsyncpa [#allocation11], 1
    %906 = vsyncpa [#allocation6], 1

</llo_original>
